<compile_context>
chip_gen: v6e
topology: v6e:2x2x1
jax: 0.10.0
libtpu: 0.0.40
codegen_flags: <defaults>
</compile_context>

<pallas_src>
import math

import jax
import jax.numpy as jnp
from jax.experimental import pallas as pl
from jax.experimental.pallas import tpu as pltpu


# ------------------------------ kernel body -------------------------------- #

def _vardrop_kernel(m_ref, x_ref, o_ref):
    # Pure elementwise multiply.  The mask block either matches the x block
    # exactly (batch_first: pre-tiled along the lane axis) or broadcasts along
    # the sublane / leading axes (time-first and the 3-D fallback).  All VPU
    # work with lane-dense loads/stores on the primary path.
    o_ref[...] = x_ref[...] * m_ref[...]


# ---------------------------- tile selection -------------------------------- #

def _divisors(n):
    small = [d for d in range(1, int(math.isqrt(n)) + 1) if n % d == 0]
    return sorted({d for lo in small for d in (lo, n // lo)})


def _pick_tile(n, unit, max_tile):
    """Tile along an axis of length n.

    Layout-legal tiles are divisors of n that are multiples of `unit`, or the
    full axis n.  Preference: largest legal tile <= max_tile; else the SMALLEST
    legal tile (never silently expands to a block that blows the byte budget);
    else n (the full axis is always layout-legal)."""
    if n <= max_tile:
        return n
    legal = [d for d in _divisors(n) if d % unit == 0 and d < n]
    if not legal:
        return n
    fit = [d for d in legal if d <= max_tile]
    return fit[-1] if fit else legal[0]


def _sublane_tile(n, dtype, max_tile):
    """Second-to-last block dim.  Hard layout requirement: multiple of 8 or the
    full axis.  Packed sub-32-bit dtypes prefer 16 (bf16) / 32 (int8, fp8) row
    multiples to avoid partial packed-sublane relayouts."""
    preferred = max(8, 32 // jnp.dtype(dtype).itemsize)
    t = _pick_tile(n, preferred, max_tile)
    if preferred > 8 and t > max_tile:
        t8 = _pick_tile(n, 8, max_tile)   # fall back to the hard requirement
        if t8 <= max_tile:
            t = t8
    return t


def _vmem_capacity_bytes():
    try:
        return int(pltpu.get_tpu_info().vmem_capacity_bytes)
    except Exception:
        return 64 * 1024 * 1024  # v7x per-TensorCore VMEM: smallest generation


# ------------------------------ launch helper ------------------------------- #

def _launch(mask_arr, x_arr, *, grid, m_block, m_idx, x_block, x_idx,
            block_bytes, mask_block_bytes, bytes_accessed, flops):
    vmem_cap = _vmem_capacity_bytes()
    # Pipelined footprint: triple-buffered x + out blocks, double-buffered mask.
    footprint = 6 * block_bytes + 2 * mask_block_bytes
    vmem_limit = int(min(max(footprint + (8 << 20), 32 << 20),
                         int(vmem_cap * 0.9)))

    def build(buffered):
        kwargs = {"pipeline_mode": pl.Buffered(3)} if buffered else {}
        x_spec = pl.BlockSpec(x_block, x_idx, **kwargs)
        o_spec = pl.BlockSpec(x_block, x_idx, **kwargs)
        m_spec = pl.BlockSpec(m_block, m_idx)
        return pl.pallas_call(
            _vardrop_kernel,
            out_shape=jax.ShapeDtypeStruct(x_arr.shape, x_arr.dtype),
            grid_spec=pltpu.PrefetchScalarGridSpec(
                num_scalar_prefetch=0,
                grid=grid,
                in_specs=[m_spec, x_spec],
                out_specs=o_spec,
            ),
            compiler_params=pltpu.CompilerParams(
                # Batch is the outer grid axis so a megacore (v7x) split keeps
                # each TensorCore's mask slab resident across its time range.
                dimension_semantics=("parallel", "parallel"),
                vmem_limit_bytes=vmem_limit,
            ),
            cost_estimate=pl.CostEstimate(
                flops=flops, transcendentals=0, bytes_accessed=bytes_accessed),
        )

    try:
        return build(True)(mask_arr, x_arr)
    except Exception:
        # pipeline_mode / pl.Buffered not supported (or not on outputs) in this
        # jax version: fall back to the default double-buffered pipeline.
        return build(False)(mask_arr, x_arr)


# ------------------------------ public wrapper ------------------------------ #

def variational_dropout(x, *, dropout, key, batch_first=True, training=True,
                        target_block_bytes=None):
    """JAX/Pallas equivalent of VariationalDropout.forward (dense tensors).

    batch_first=True  -> x is (B, T, H);  batch_first=False -> x is (T, B, H).
    The same (B, H) mask is applied at every time step; kept entries are scaled
    by 1/(1 - dropout).
    """
    if not training or dropout <= 0.0:
        return x
    if dropout >= 1.0:
        # keep_prob == 0: everything is dropped (PyTorch's 0/0 is ill-defined).
        return jnp.zeros_like(x)

    if batch_first:
        B, T, H = x.shape
    else:
        T, B, H = x.shape
    keep_prob = 1.0 - float(dropout)

    # One Bernoulli(keep_prob) draw per (batch, hidden) element, shared across
    # time, with the 1/keep_prob scale folded in so the kernel is one multiply.
    # NOTE: the scaled mask is stored in x.dtype; for bf16 inputs 1/keep_prob is
    # rounded to bf16 before the multiply (vs. PyTorch's f32 divide) -- an
    # O(2^-8) relative difference on kept values only, irrelevant for dropout.
    keep = jax.random.bernoulli(key, keep_prob, (B, H))
    mask = jnp.where(keep, 1.0 / keep_prob, 0.0).astype(x.dtype)

    itemsize = jnp.dtype(x.dtype).itemsize
    row_bytes = H * itemsize
    vmem_cap = _vmem_capacity_bytes()
    # Worst case 8 block-sized pipeline buffers must stay around ~2/3 of VMEM.
    block_cap = max(vmem_cap // 12, 1 << 20)
    if target_block_bytes is None:
        target_block_bytes = 4 << 20      # ~4 MiB: good on v5e/v6e/v7x alike
    target_block_bytes = int(min(max(int(target_block_bytes), 64 * 1024),
                                 block_cap))

    lane_unit = 128 // math.gcd(H, 128)   # rows per 128-lane-aligned chunk
    bytes_accessed = 2 * B * T * H * itemsize + B * H * itemsize
    flops = B * T * H

    if batch_first:
        # ---- Plan A: lane-dense 2-D layout, x -> (B, T*H) -------------------
        tb = _sublane_tile(B, x.dtype,
                           max(1, target_block_bytes // (lane_unit * row_bytes)))
        tt = _pick_tile(T, lane_unit,
                        max(1, target_block_bytes // (tb * row_bytes)))
        block_bytes = tb * tt * row_bytes
        if block_bytes <= block_cap:
            x2 = x.reshape(B, T * H)
            # Mask pre-tiled along ONE time tile (B*tt*H bytes total, read once
            # per batch tile) so the body is a same-shape multiply and its block
            # stays VMEM-resident across the whole inner time loop.
            mask2 = jnp.tile(mask, (1, tt))
            out = _launch(
                mask2, x2, grid=(B // tb, T // tt),
                m_block=(tb, tt * H), m_idx=lambda b, t: (b, 0),
                x_block=(tb, tt * H), x_idx=lambda b, t: (b, t),
                block_bytes=block_bytes, mask_block_bytes=block_bytes,
                bytes_accessed=bytes_accessed, flops=flops)
            return out.reshape(x.shape)
        # ---- Plan B: bounded 3-D fallback (last dim = H, narrow stores) -----
        tt = _sublane_tile(T, x.dtype, max(1, target_block_bytes // row_bytes))
        tb = _pick_tile(B, 1, max(1, target_block_bytes // (tt * row_bytes)))
        return _launch(
            mask.reshape(B, 1, H), x, grid=(B // tb, T // tt),
            m_block=(tb, 1, H), m_idx=lambda b, t: (b, 0, 0),
            x_block=(tb, tt, H), x_idx=lambda b, t: (b, t, 0),
            block_bytes=tb * tt * row_bytes, mask_block_bytes=tb * row_bytes,
            bytes_accessed=bytes_accessed, flops=flops)

    # batch_first == False: x is (T, B, H), handled natively (no transpose).
    # ---- Plan A: lane-dense 2-D layout, x -> (T, B*H) -----------------------
    tb = _pick_tile(B, lane_unit, max(1, target_block_bytes // (8 * row_bytes)))
    tt = _sublane_tile(T, x.dtype, max(1, target_block_bytes // (tb * row_bytes)))
    block_bytes = tb * tt * row_bytes
    if block_bytes <= block_cap:
        x2 = x.reshape(T, B * H)
        out = _launch(
            mask.reshape(1, B * H), x2, grid=(B // tb, T // tt),
            m_block=(1, tb * H), m_idx=lambda b, t: (0, b),
            x_block=(tt, tb * H), x_idx=lambda b, t: (t, b),
            block_bytes=block_bytes, mask_block_bytes=tb * row_bytes,
            bytes_accessed=bytes_accessed, flops=flops)
        return out.reshape(x.shape)
    # ---- Plan B: bounded 3-D fallback ----------------------------------------
    tb = _sublane_tile(B, x.dtype, max(1, target_block_bytes // (8 * row_bytes)))
    tt = _pick_tile(T, 1, max(1, target_block_bytes // (tb * row_bytes)))
    return _launch(
        mask.reshape(1, B, H), x, grid=(B // tb, T // tt),
        m_block=(1, tb, H), m_idx=lambda b, t: (0, b, 0),
        x_block=(tt, tb, H), x_idx=lambda b, t: (t, b, 0),
        block_bytes=tb * tt * row_bytes, mask_block_bytes=tb * row_bytes,
        bytes_accessed=bytes_accessed, flops=flops)


# ----------------------------------- demo ----------------------------------- #

if __name__ == "__main__":
    root = jax.random.PRNGKey(0)
    xkey, mkey, x2key, m2key = jax.random.split(root, 4)

    # Small demo shape (B, T, H).
    B, T, H = 2, 16, 32
    p = 0.5
    kp = 1.0 - p
    x = jax.random.normal(xkey, (B, T, H), dtype=jnp.float32)

    y = variational_dropout(x, dropout=p, key=mkey, batch_first=True,
                            training=True)
    y = jax.block_until_ready(y)

    # Reference (same mask derivation as the wrapper).
    keep = jax.random.bernoulli(mkey, kp, (B, H))
    ref_mask = jnp.where(keep, 1.0 / kp, 0.0).astype(x.dtype)
    ref = x * ref_mask[:, None, :]

    assert y.shape == x.shape and y.dtype == x.dtype
    assert bool(jnp.allclose(y, ref, atol=1e-6, rtol=1e-6))
    # Mask must be shared across the temporal axis (dropped units stay zero).
    kept = jnp.abs(ref_mask) > 0
    assert bool(jnp.all(jnp.where(kept[:, None, :], True, y == 0)))

    # batch_first=False path: (T, B, H), handled without any transpose.
    x_tf = jnp.swapaxes(x, 0, 1)
    y_tf = variational_dropout(x_tf, dropout=p, key=mkey, batch_first=False,
                               training=True)
    y_tf = jax.block_until_ready(y_tf)
    assert bool(jnp.allclose(jnp.swapaxes(y_tf, 0, 1), ref, atol=1e-6, rtol=1e-6))

    # Eval mode / p == 0 are identity.
    assert bool(jnp.array_equal(
        variational_dropout(x, dropout=p, key=mkey, training=False), x))
    assert bool(jnp.array_equal(
        variational_dropout(x, dropout=0.0, key=mkey, training=True), x))

    # bf16 path (exercises the dtype-aware sublane tiling).
    y_bf = variational_dropout(x.astype(jnp.bfloat16), dropout=p, key=mkey,
                               batch_first=True, training=True)
    ref_bf = x.astype(jnp.bfloat16) * ref_mask.astype(jnp.bfloat16)[:, None, :]
    assert bool(jnp.allclose(y_bf.astype(jnp.float32),
                             ref_bf.astype(jnp.float32), atol=1e-2, rtol=1e-2))

    # Multi-block grid (both grid axes > 1, H not a multiple of 128) with a
    # tiny byte budget to exercise the lane-dense tiler and mask residency.
    B2, T2, H2 = 64, 64, 96
    p2 = 0.3
    kp2 = 1.0 - p2
    x2 = jax.random.normal(x2key, (B2, T2, H2), dtype=jnp.float32)
    keep2 = jax.random.bernoulli(m2key, kp2, (B2, H2))
    ref2 = x2 * jnp.where(keep2, 1.0 / kp2, 0.0).astype(x2.dtype)[:, None, :]

    y2 = variational_dropout(x2, dropout=p2, key=m2key, batch_first=True,
                             training=True, target_block_bytes=64 * 1024)
    y2 = jax.block_until_ready(y2)
    assert bool(jnp.allclose(y2, ref2, atol=1e-5, rtol=1e-5))

    x2_tf = jnp.swapaxes(x2, 0, 1)
    y2_tf = variational_dropout(x2_tf, dropout=p2, key=m2key, batch_first=False,
                                training=True, target_block_bytes=64 * 1024)
    y2_tf = jax.block_until_ready(y2_tf)
    assert bool(jnp.allclose(jnp.swapaxes(y2_tf, 0, 1), ref2,
                             atol=1e-5, rtol=1e-5))

    print("KERNEL_OK")
</pallas_src>

<mosaic_0001>
module attributes {stable_mosaic.version = 11 : i64} {
  func.func @_vardrop_kernel(%arg0: i32, %arg1: i32, %arg2: memref<2x512xf32, #tpu.memory_space<vmem>>, %arg3: memref<2x512xf32, #tpu.memory_space<vmem>>, %arg4: memref<2x512xf32, #tpu.memory_space<vmem>>) attributes {dimension_semantics = [#tpu.dimension_semantics<parallel>, #tpu.dimension_semantics<parallel>], iteration_bounds = array<i64: 1, 1>, scalar_prefetch = 0 : i64, scratch_operands = 0 : i64, tpu.core_type = #tpu.core_type<tc>, window_params = [{transform_indices = @transform_0, window_bounds = array<i64: 2, 512>}, {transform_indices = @transform_1, window_bounds = array<i64: 2, 512>}, {transform_indices = @transform_2, window_bounds = array<i64: 2, 512>}]} {
    %c0 = arith.constant 0 : index
    %c0_0 = arith.constant 0 : index
    %0 = vector.load %arg3[%c0, %c0_0] : memref<2x512xf32, #tpu.memory_space<vmem>>, vector<2x512xf32>
    %c0_1 = arith.constant 0 : index
    %c0_2 = arith.constant 0 : index
    %1 = vector.load %arg2[%c0_1, %c0_2] : memref<2x512xf32, #tpu.memory_space<vmem>>, vector<2x512xf32>
    %2 = arith.mulf %0, %1 : vector<2x512xf32>
    %c0_3 = arith.constant 0 : index
    %c0_4 = arith.constant 0 : index
    %3 = vector.load %arg4[%c0_3, %c0_4] : memref<2x512xf32, #tpu.memory_space<vmem>>, vector<2x512xf32>
    tpu.vector_store %arg4[%c0_3, %c0_4], %2 {strides = array<i32>} : memref<2x512xf32, #tpu.memory_space<vmem>>, vector<2x512xf32>,
    return
  }
  func.func @transform_0(%arg0: i32, %arg1: i32) -> (i32, i32) {
    %c0_i32 = arith.constant 0 : i32
    %c0_i32_0 = arith.constant 0 : i32
    return %arg0, %c0_i32 : i32, i32
  }
  func.func @transform_1(%arg0: i32, %arg1: i32) -> (i32, i32) {
    %c0_i32 = arith.constant 0 : i32
    return %arg0, %arg1 : i32, i32
  }
  func.func @transform_2(%arg0: i32, %arg1: i32) -> (i32, i32) {
    %c0_i32 = arith.constant 0 : i32
    return %arg0, %arg1 : i32, i32
  }
}

</mosaic_0001>

<llo_original>
// kernel: tpu_custom_call.1
$region0: #{tpu_custom_call.1}
  #allocation0 [shape = 'u32[]', space=smem, size = 0x4, offset = 0x4, fixed_abs, tag = 'smem constant byte address 0x4 - core index']
  #allocation1 [shape = 'u32[144,128]{1,0:T(1,128)}', space=vmem, size = 0x12000, scoped, tag = 'internal scratch']
  %s0 = inlined_call_operand.hbm [shape: f32[2,512], index: 0, kind: input, shape index: {}]
  %s1 = inlined_call_operand.hbm [shape: f32[2,512], index: 1, kind: input, shape index: {}]
  %s2 = inlined_call_operand.hbm [shape: f32[2,512], index: 2, kind: output, shape index: {}]
  %s3 = sld [smem:[#allocation0]]
  $region26: #{tpu_custom_call.1} parent=0
    _
  %s5 = ssub.s32 1, %s3
  %s6 = scalar_select 0, %s5, %s3
  $region1: #{tpu_custom_call.1} parent=0
    #allocation2 [shape = 'u8[4096]{0}', space=vmem, size = 0x1000, scoped, tag = 'input window, operand 0, single buffered']
    #allocation3 [shape = 's32[1]{0}', space=sflag, size = 0x4, scoped, tag = 'scoped memory for tpu_custom_call.1']
    #allocation4 [shape = 's32[1]{0}', space=sflag, size = 0x4, scoped, tag = 'scoped memory for tpu_custom_call.1']
    #allocation5 [shape = 'u8[4096]{0}', space=vmem, size = 0x1000, scoped, tag = 'input window, operand 1, single buffered']
    #allocation6 [shape = 's32[1]{0}', space=sflag, size = 0x4, scoped, tag = 'scoped memory for tpu_custom_call.1']
    #allocation7 [shape = 'u8[4096]{0}', space=vmem, size = 0x1000, scoped, tag = 'output window, operand 0, single buffered']
    %7 = vsyncpa [#allocation3], 0
    %8 = vsyncpa [#allocation6], 0
    %9 = vsyncpa [#allocation4], 0
    // Predicated region
    $region2: #{tpu_custom_call.1} parent=1 // pred_check
      _
    $region3: #{tpu_custom_call.1} parent=1 // pred_check_branch
      %11 = sbr.rel (0) target = $region5
    $region4: #{tpu_custom_call.1} parent=1 // pred_region
      %s13 = ssub.s32 128, 128
      %14 = vsyncadd [#allocation3], %s13
      %s16 = sshll.u32 [#allocation2], 4
      %s17 = int_to_ptr.vmem [resolvable:$true] %s16
      %19 = dma.hbm_to_vmem [thread:$0]  %s0, 128, %s17, [#allocation3]
    $region5: #{tpu_custom_call.1} parent=1 // pred_fallthru
      _
    // Predicated region
    $region6: #{tpu_custom_call.1} parent=1 // pred_check
      _
    $region7: #{tpu_custom_call.1} parent=1 // pred_check_branch
      %21 = sbr.rel (0) target = $region9
    $region8: #{tpu_custom_call.1} parent=1 // pred_region
      %s23 = ssub.s32 128, 128
      %24 = vsyncadd [#allocation6], %s23
      %s26 = sshll.u32 [#allocation5], 4
      %s27 = int_to_ptr.vmem [resolvable:$true] %s26
      %29 = dma.hbm_to_vmem [thread:$0]  %s1, 128, %s27, [#allocation6]
    $region9: #{tpu_custom_call.1} parent=1 // pred_fallthru
      _
    // Predicated region
    $region10: #{tpu_custom_call.1} parent=1 // pred_check
      _
    $region11: #{tpu_custom_call.1} parent=1 // pred_check_branch
      %31 = sbr.rel (0) target = $region13
    $region12: #{tpu_custom_call.1} parent=1 // pred_region
      %32 = dma.done [#allocation3], 128
    $region13: #{tpu_custom_call.1} parent=1 // pred_fallthru
      _
    // Predicated region
    $region14: #{tpu_custom_call.1} parent=1 // pred_check
      _
    $region15: #{tpu_custom_call.1} parent=1 // pred_check_branch
      %34 = sbr.rel (0) target = $region17
    $region16: #{tpu_custom_call.1} parent=1 // pred_region
      %35 = dma.done [#allocation6], 128
    $region17: #{tpu_custom_call.1} parent=1 // pred_fallthru
      _
    %v36 = vld [vmem:[#allocation5] sm:$0xff]
    %v37 = vld [vmem:[#allocation2] sm:$0xff]
    %v38 = vmul.f32 %v36, %v37
    %39 = vst [vmem:[#allocation7] sm:$0xff] %v38
    // Predicated region
    $region18: #{tpu_custom_call.1} parent=1 // pred_check
      _
    $region19: #{tpu_custom_call.1} parent=1 // pred_check_branch
      %41 = sbr.rel (0) target = $region21
    $region20: #{tpu_custom_call.1} parent=1 // pred_region
      %s43 = ssub.s32 128, 128
      %44 = vsyncadd [#allocation4], %s43
      %s46 = sshll.u32 [#allocation7], 4
      %s47 = int_to_ptr.vmem [resolvable:$true] %s46
      %49 = dma.vmem_to_hbm [thread:$0]  %s47, 128, %s2, [#allocation4]
    $region21: #{tpu_custom_call.1} parent=1 // pred_fallthru
      _
    // Predicated region
    $region22: #{tpu_custom_call.1} parent=1 // pred_check
      _
    $region23: #{tpu_custom_call.1} parent=1 // pred_check_branch
      %51 = sbr.rel (0) target = $region25
    $region24: #{tpu_custom_call.1} parent=1 // pred_region
      %52 = dma.done [#allocation4], 128
    $region25: #{tpu_custom_call.1} parent=1 // pred_fallthru
      _
    %53 = vsyncpa [#allocation3], 1
    %54 = vsyncpa [#allocation6], 1
    %55 = vsyncpa [#allocation4], 1

</llo_original>
